<compile_context>
chip_gen: v6e
topology: v6e:2x2x1
jax: 0.10.0
libtpu: 0.0.40
codegen_flags: <defaults>
</compile_context>

<pallas_src>
import functools

import jax
import jax.numpy as jnp
from jax import lax
from jax.experimental import pallas as pl
from jax.experimental.pallas import tpu as pltpu


def _round_up(a, b):
    return (a + b - 1) // b * b


def _pick_vmem_limit():
    # v7x TensorCores have 64 MiB of VMEM; v4/v5e/v6e have 128 MiB.
    kind = jax.devices()[0].device_kind.lower()
    if "v7" in kind or "7x" in kind:
        return 48 * 1024 * 1024
    return 100 * 1024 * 1024


# --------------------------- kernel 1: node pass ----------------------------
def _node_proj_kernel(x_ref, wcat_ref, proj_ref, ssrc_ref, strg_ref, *, hf, h):
    # Single fused bf16 MXU matmul (f32 accumulate):
    #   [proj | s_src | s_trg] = x @ [W^T | W^T A_src | W^T A_trg]
    y = jnp.dot(x_ref[...], wcat_ref[...], preferred_element_type=jnp.float32)
    proj_ref[...] = y[:, :hf]                 # (TN, HF)
    ssrc_ref[...] = y[:, hf:hf + h]           # (TN, H) compact per-head scores
    strg_ref[...] = y[:, hf + h:]             # (TN, H)


# ----------------- kernel 2: raw edge scores + global range ------------------
def _edge_score_kernel(eidx_hbm, ssrc_ref, strg_ref,
                       sraw_ref, smax_ref, smin_ref,
                       idx_smem, dma_sem, *, n_edges, te):
    t = pl.program_id(0)

    # DMA this tile's (2, TE) edge indices HBM -> SMEM (bounded SMEM use).
    cp = pltpu.make_async_copy(eidx_hbm.at[t], idx_smem, dma_sem)
    cp.start()
    cp.wait()

    # Per-edge gather of the compact (1, H) node scores; raw (pre-leakyReLU)
    # per-edge scores go straight to the (TE, H) output tile.
    def body(i, _):
        si = idx_smem[0, i]
        ti = idx_smem[1, i]
        sraw_ref[pl.ds(i, 1), :] = (ssrc_ref[pl.ds(si, 1), :] +
                                    strg_ref[pl.ds(ti, 1), :])
        return 0

    lax.fori_loop(0, te, body, 0, unroll=8)

    # Vectorized tile-level max/min of the raw scores (padded edges masked).
    # leakyReLU is monotonic, so it is applied once to the reduced scalars in
    # kernel 3 rather than per edge here.
    sraw = sraw_ref[...]
    eid = t * te + lax.broadcasted_iota(jnp.int32, sraw.shape, 0)
    valid = eid < n_edges
    tmax = jnp.max(jnp.where(valid, sraw, -jnp.inf), axis=0, keepdims=True)
    tmax = jnp.max(tmax, axis=1, keepdims=True)                    # (1, 1)
    tmin = jnp.min(jnp.where(valid, sraw, jnp.inf), axis=0, keepdims=True)
    tmin = jnp.min(tmin, axis=1, keepdims=True)                    # (1, 1)

    @pl.when(t == 0)
    def _():
        smax_ref[...] = tmax
        smin_ref[...] = tmin

    @pl.when(t != 0)
    def _():
        smax_ref[...] = jnp.maximum(smax_ref[...], tmax)
        smin_ref[...] = jnp.minimum(smin_ref[...], tmin)


# -------------- kernel 3: exp + gather + packed scatter-add ------------------
def _edge_aggregate_kernel(eidx_hbm, sraw_ref, proj_ref, smax_ref, smin_ref,
                           bias_ref, bmat_ref, out_ref,
                           idx_smem, dma_sem, acc_ref, exs_ref,
                           *, n_edges, te, hf):
    t = pl.program_id(0)

    # Prefetch this tile's edge indices while the tile-level vector math runs.
    cp = pltpu.make_async_copy(eidx_hbm.at[t], idx_smem, dma_sem)
    cp.start()

    @pl.when(t == 0)
    def _():
        acc_ref[...] = jnp.zeros_like(acc_ref)   # packed [numerator | denom]

    # ---- tile-level vector math, hoisted out of the per-edge loop ----
    sraw = sraw_ref[...]                                     # (TE, H)
    s = jnp.where(sraw > 0.0, sraw, 0.2 * sraw)              # leakyReLU(0.2)
    smax = smax_ref[...]
    smin = smin_ref[...]
    smax = jnp.where(smax > 0.0, smax, 0.2 * smax)           # leaky(max)==max(leaky)
    smin = jnp.where(smin > 0.0, smin, 0.2 * smin)
    # TODO(synk): coef is inf when every edge score is identical (smax==smin);
    #             the reference module has the same degenerate 0/0.
    coef = 3.0 / (smax - smin)
    ex_h = jnp.exp(coef * (s - smax))                        # (TE, H)
    eid = t * te + lax.broadcasted_iota(jnp.int32, ex_h.shape, 0)
    ex_h = jnp.where(eid < n_edges, ex_h, 0.0)               # zero padded edges
    # Broadcast each head's exp to that head's F lanes via a tiny constant matmul.
    exs_ref[...] = jnp.dot(ex_h, bmat_ref[...],
                           preferred_element_type=jnp.float32)   # (TE, HF)

    cp.wait()

    # ---- per-edge: gather proj[src], one packed RMW scatter over trg ----
    def body(i, _):
        si = idx_smem[0, i]
        ti = idx_smem[1, i]
        ex = exs_ref[pl.ds(i, 1), :]                         # (1, HF)
        p = proj_ref[pl.ds(si, 1), :]                        # (1, HF)
        acc_ref[pl.ds(ti, 1), :] += jnp.concatenate([ex * p, ex], axis=1)
        return 0

    lax.fori_loop(0, te, body, 0, unroll=8)

    @pl.when(t == pl.num_programs(0) - 1)
    def _():
        num = acc_ref[:, :hf]
        den = acc_ref[:, hf:]
        y = num / (den + 1e-16) + bias_ref[...]
        out_ref[...] = jnp.where(y > 0.0, y, jnp.exp(y) - 1.0)   # ELU


# --------------------------------- wrapper -----------------------------------
def gat_layer_forward(identity_features, in_nodes_features, edge_index,
                      map_edge_idx, params, num_of_heads, num_out_features):
    """Pallas implementation of GATLayer.forward (concat=True, residual=True)."""
    N, f_in = in_nodes_features.shape
    E = int(edge_index.shape[1])
    H, F = num_of_heads, num_out_features
    HF = H * F
    vmem_limit = _pick_vmem_limit()

    W = params["linear_proj_w"]           # (H*F, Fin)  torch Linear weight
    a_src = params["scoring_fn_source"]   # (H, F)
    a_trg = params["scoring_fn_target"]   # (H, F)
    bias = params["bias"]                 # (H*F,)

    # ---- parameter folding (weights only, cheap host-side glue) ----
    wt = W.T.astype(jnp.float32)                               # (Fin, HF)
    eye_h = jnp.eye(H, dtype=jnp.float32)
    # A[h*F+f, h] = a[h, f]  so that (x @ W^T) @ A gives per-head scores (N, H)
    A_src = (a_src[:, :, None] * eye_h[:, None, :]).reshape(HF, H)
    A_trg = (a_trg[:, :, None] * eye_h[:, None, :]).reshape(HF, H)
    w_cat = jnp.concatenate([wt, wt @ A_src, wt @ A_trg], axis=1)   # (Fin, HF+2H)
    w_cat = w_cat.astype(jnp.bfloat16)        # bf16 MXU inputs, f32 accumulate
    # bmat[h, h*F+f] = 1: broadcasts a (., H) row to the (., HF) head layout
    bmat = jnp.repeat(eye_h, F, axis=1)                        # (H, HF)
    bias2d = bias.reshape(1, HF).astype(jnp.float32)

    # ---- tiling / padding ----
    TN = min(1024, _round_up(N, 16))       # node tile (bf16 sublane aligned)
    N_pad = _round_up(N, TN)
    TE = min(256, _round_up(E, 8))         # edges per grid step
    E_pad = _round_up(E, TE)
    n_et = E_pad // TE

    x = in_nodes_features.astype(jnp.float32)
    if N_pad != N:
        x = jnp.pad(x, ((0, N_pad - N), (0, 0)))
    x_bf16 = x.astype(jnp.bfloat16)

    eidx = edge_index.astype(jnp.int32)
    if E_pad != E:
        eidx = jnp.pad(eidx, ((0, 0), (0, E_pad - E)))          # pad -> node 0
    eidx_tiles = eidx.reshape(2, n_et, TE).transpose(1, 0, 2)   # (n_et, 2, TE)

    # ---- kernel 1: fused projection + compact per-head score projections ----
    proj, ssrc, strg = pl.pallas_call(
        functools.partial(_node_proj_kernel, hf=HF, h=H),
        grid=(N_pad // TN,),
        in_specs=[pl.BlockSpec((TN, f_in), lambda i: (i, 0)),
                  pl.BlockSpec((f_in, HF + 2 * H), lambda i: (0, 0))],
        out_specs=(pl.BlockSpec((TN, HF), lambda i: (i, 0)),
                   pl.BlockSpec((TN, H), lambda i: (i, 0)),
                   pl.BlockSpec((TN, H), lambda i: (i, 0))),
        out_shape=(jax.ShapeDtypeStruct((N_pad, HF), jnp.float32),
                   jax.ShapeDtypeStruct((N_pad, H), jnp.float32),
                   jax.ShapeDtypeStruct((N_pad, H), jnp.float32)),
        compiler_params=pltpu.CompilerParams(
            dimension_semantics=("parallel",),
            vmem_limit_bytes=vmem_limit),
    )(x_bf16, w_cat)

    # ---- kernel 2: raw per-edge scores + global max/min ----
    sraw, smax, smin = pl.pallas_call(
        functools.partial(_edge_score_kernel, n_edges=E, te=TE),
        grid=(n_et,),
        in_specs=[pl.BlockSpec(memory_space=pl.ANY),
                  pl.BlockSpec((N_pad, H), lambda t: (0, 0)),
                  pl.BlockSpec((N_pad, H), lambda t: (0, 0))],
        out_specs=(pl.BlockSpec((TE, H), lambda t: (t, 0)),
                   pl.BlockSpec((1, 1), lambda t: (0, 0)),
                   pl.BlockSpec((1, 1), lambda t: (0, 0))),
        out_shape=(jax.ShapeDtypeStruct((E_pad, H), jnp.float32),
                   jax.ShapeDtypeStruct((1, 1), jnp.float32),
                   jax.ShapeDtypeStruct((1, 1), jnp.float32)),
        scratch_shapes=[pltpu.SMEM((2, TE), jnp.int32),
                        pltpu.SemaphoreType.DMA],
        compiler_params=pltpu.CompilerParams(
            dimension_semantics=("arbitrary",),
            vmem_limit_bytes=vmem_limit),
    )(eidx_tiles, ssrc, strg)

    # ---- kernel 3: exp + gather proj[src] + packed scatter-add over trg ----
    out_padded = pl.pallas_call(
        functools.partial(_edge_aggregate_kernel, n_edges=E, te=TE, hf=HF),
        grid=(n_et,),
        in_specs=[pl.BlockSpec(memory_space=pl.ANY),
                  pl.BlockSpec((TE, H), lambda t: (t, 0)),
                  pl.BlockSpec((N_pad, HF), lambda t: (0, 0)),
                  pl.BlockSpec((1, 1), lambda t: (0, 0)),
                  pl.BlockSpec((1, 1), lambda t: (0, 0)),
                  pl.BlockSpec((1, HF), lambda t: (0, 0)),
                  pl.BlockSpec((H, HF), lambda t: (0, 0))],
        out_specs=pl.BlockSpec((N_pad, HF), lambda t: (0, 0)),
        out_shape=jax.ShapeDtypeStruct((N_pad, HF), jnp.float32),
        scratch_shapes=[pltpu.SMEM((2, TE), jnp.int32),
                        pltpu.SemaphoreType.DMA,
                        pltpu.VMEM((N_pad, 2 * HF), jnp.float32),
                        pltpu.VMEM((TE, HF), jnp.float32)],
        compiler_params=pltpu.CompilerParams(
            dimension_semantics=("arbitrary",),
            vmem_limit_bytes=vmem_limit),
    )(eidx_tiles, sraw, proj, smax, smin, bias2d, bmat)

    out = out_padded[:N]

    # residual=True: concat identity features along the feature axis (glue)
    out_nodes_features = jnp.concatenate([out, identity_features], axis=1)
    # concat=True branch of forward()
    return identity_features, out_nodes_features, edge_index, map_edge_idx


# ---------------------- pure-JAX reference (for checking) --------------------
def gat_layer_reference(identity_features, x, edge_index, params, H, F):
    N = x.shape[0]
    W = params["linear_proj_w"]
    proj = (x @ W.T).reshape(N, H, F)
    s_src = (proj * params["scoring_fn_source"][None]).sum(-1)
    s_trg = (proj * params["scoring_fn_target"][None]).sum(-1)
    src, trg = edge_index[0], edge_index[1]
    se = s_src[src] + s_trg[trg]
    se = jnp.where(se > 0, se, 0.2 * se)
    smax, smin = se.max(), se.min()
    se = 3.0 * (se - smax) / (smax - smin)
    ex = jnp.exp(se)
    denom = jax.ops.segment_sum(ex, trg, num_segments=N)[trg]
    att = ex / (denom + 1e-16)
    lifted = proj[src] * att[..., None]
    agg = jax.ops.segment_sum(lifted, trg, num_segments=N).reshape(N, H * F)
    out = agg + params["bias"]
    out = jnp.where(out > 0, out, jnp.exp(out) - 1.0)
    return jnp.concatenate([out, identity_features], axis=1)


if __name__ == "__main__":
    # small shapes consistent with the module (multi-tile edge grid exercised)
    N = 64            # number of nodes
    F_IN = 32         # num_in_features
    H = 4             # num_of_heads
    F_OUT = 8         # num_out_features
    E = 300           # number of edges (2 edge tiles of 256 incl. padding)
    N_ID = 16         # num_in_identity

    key = jax.random.PRNGKey(0)
    k1, k2, k3, k4, k5, k6, k7 = jax.random.split(key, 7)

    # deterministic Xavier-uniform-style parameter init (shapes from __init__)
    lim_w = (6.0 / (F_IN + H * F_OUT)) ** 0.5
    lim_s = (6.0 / (H * F_OUT + F_OUT)) ** 0.5
    params = {
        "linear_proj_w": jax.random.uniform(k1, (H * F_OUT, F_IN),
                                            minval=-lim_w, maxval=lim_w,
                                            dtype=jnp.float32),
        "scoring_fn_source": jax.random.uniform(k2, (H, F_OUT),
                                                minval=-lim_s, maxval=lim_s,
                                                dtype=jnp.float32),
        "scoring_fn_target": jax.random.uniform(k3, (H, F_OUT),
                                                minval=-lim_s, maxval=lim_s,
                                                dtype=jnp.float32),
        "bias": jnp.zeros((H * F_OUT,), jnp.float32),   # init_params zeros bias
    }

    # deterministic example inputs
    identity_features = jax.random.normal(k4, (N, N_ID), dtype=jnp.float32)
    in_nodes_features = jax.random.normal(k5, (N, F_IN), dtype=jnp.float32)
    edge_index = jnp.stack([
        jax.random.randint(k6, (E,), 0, N, dtype=jnp.int32),
        jax.random.randint(k7, (E,), 0, N, dtype=jnp.int32),
    ], axis=0)                                          # (2, E)
    map_edge_idx = jnp.arange(E, dtype=jnp.int32)

    ident_out, out_nodes_features, eidx_out, midx_out = gat_layer_forward(
        identity_features, in_nodes_features, edge_index, map_edge_idx,
        params, H, F_OUT)
    out_nodes_features = jax.block_until_ready(out_nodes_features)

    # sanity check against the pure-JAX f32 reference (kernel uses bf16 MXU
    # inputs with f32 accumulation, hence the relaxed tolerance)
    ref = gat_layer_reference(identity_features, in_nodes_features, edge_index,
                              params, H, F_OUT)
    assert out_nodes_features.shape == (N, H * F_OUT + N_ID)
    max_err = float(jnp.max(jnp.abs(out_nodes_features - ref)))
    assert jnp.allclose(out_nodes_features, ref, atol=5e-2, rtol=5e-2), max_err

    print("KERNEL_OK")
</pallas_src>

<mosaic_0001>
module attributes {stable_mosaic.version = 11 : i64} {
  func.func @_node_proj_kernel(%arg0: i32, %arg1: memref<64x32xbf16, #tpu.memory_space<vmem>>, %arg2: memref<32x40xbf16, #tpu.memory_space<vmem>>, %arg3: memref<64x32xf32, #tpu.memory_space<vmem>>, %arg4: memref<64x4xf32, #tpu.memory_space<vmem>>, %arg5: memref<64x4xf32, #tpu.memory_space<vmem>>) attributes {dimension_semantics = [#tpu.dimension_semantics<parallel>], iteration_bounds = array<i64: 1>, scalar_prefetch = 0 : i64, scratch_operands = 0 : i64, tpu.core_type = #tpu.core_type<tc>, window_params = [{transform_indices = @transform_0, window_bounds = array<i64: 64, 32>}, {pipeline_mode = #tpu.pipeline_mode<synchronous>, transform_indices = @transform_1, window_bounds = array<i64: 32, 40>}, {transform_indices = @transform_2, window_bounds = array<i64: 64, 32>}, {transform_indices = @transform_3, window_bounds = array<i64: 64, 4>}, {transform_indices = @transform_4, window_bounds = array<i64: 64, 4>}]} {
    %c0 = arith.constant 0 : index
    %c0_0 = arith.constant 0 : index
    %0 = vector.load %arg1[%c0, %c0_0] : memref<64x32xbf16, #tpu.memory_space<vmem>>, vector<64x32xbf16>
    %c0_1 = arith.constant 0 : index
    %c0_2 = arith.constant 0 : index
    %1 = vector.load %arg2[%c0_1, %c0_2] : memref<32x40xbf16, #tpu.memory_space<vmem>>, vector<32x40xbf16>
    %cst = arith.constant dense<0.000000e+00> : vector<64x40xf32>
    %2 = tpu.matmul %0, %1, %cst {dimension_numbers = #tpu.dot_dimension_numbers<[1], [0], [0], [1], [0, 0, 1, 1], [], []>} : vector<64x32xbf16>, vector<32x40xbf16>, vector<64x40xf32> -> vector<64x40xf32>
    %3 = vector.extract_strided_slice %2 {offsets = [0, 0], sizes = [64, 32], strides = [1, 1]} : vector<64x40xf32> to vector<64x32xf32>
    %c0_3 = arith.constant 0 : index
    %c0_4 = arith.constant 0 : index
    %4 = vector.load %arg3[%c0_3, %c0_4] : memref<64x32xf32, #tpu.memory_space<vmem>>, vector<64x32xf32>
    tpu.vector_store %arg3[%c0_3, %c0_4], %3 {strides = array<i32>} : memref<64x32xf32, #tpu.memory_space<vmem>>, vector<64x32xf32>,
    %5 = vector.extract_strided_slice %2 {offsets = [0, 32], sizes = [64, 4], strides = [1, 1]} : vector<64x40xf32> to vector<64x4xf32>
    %c0_5 = arith.constant 0 : index
    %c0_6 = arith.constant 0 : index
    %6 = vector.load %arg4[%c0_5, %c0_6] : memref<64x4xf32, #tpu.memory_space<vmem>>, vector<64x4xf32>
    tpu.vector_store %arg4[%c0_5, %c0_6], %5 {strides = array<i32>} : memref<64x4xf32, #tpu.memory_space<vmem>>, vector<64x4xf32>,
    %7 = vector.extract_strided_slice %2 {offsets = [0, 36], sizes = [64, 4], strides = [1, 1]} : vector<64x40xf32> to vector<64x4xf32>
    %c0_7 = arith.constant 0 : index
    %c0_8 = arith.constant 0 : index
    %8 = vector.load %arg5[%c0_7, %c0_8] : memref<64x4xf32, #tpu.memory_space<vmem>>, vector<64x4xf32>
    tpu.vector_store %arg5[%c0_7, %c0_8], %7 {strides = array<i32>} : memref<64x4xf32, #tpu.memory_space<vmem>>, vector<64x4xf32>,
    return
  }
  func.func @transform_0(%arg0: i32) -> (i32, i32) {
    %c0_i32 = arith.constant 0 : i32
    %c0_i32_0 = arith.constant 0 : i32
    return %arg0, %c0_i32 : i32, i32
  }
  func.func @transform_1(%arg0: i32) -> (i32, i32) {
    %c0_i32 = arith.constant 0 : i32
    %c0_i32_0 = arith.constant 0 : i32
    %c0_i32_1 = arith.constant 0 : i32
    return %c0_i32, %c0_i32_0 : i32, i32
  }
  func.func @transform_2(%arg0: i32) -> (i32, i32) {
    %c0_i32 = arith.constant 0 : i32
    %c0_i32_0 = arith.constant 0 : i32
    return %arg0, %c0_i32 : i32, i32
  }
  func.func @transform_3(%arg0: i32) -> (i32, i32) {
    %c0_i32 = arith.constant 0 : i32
    %c0_i32_0 = arith.constant 0 : i32
    return %arg0, %c0_i32 : i32, i32
  }
  func.func @transform_4(%arg0: i32) -> (i32, i32) {
    %c0_i32 = arith.constant 0 : i32
    %c0_i32_0 = arith.constant 0 : i32
    return %arg0, %c0_i32 : i32, i32
  }
}

</mosaic_0001>

<llo_original>
// kernel: tpu_custom_call.1
$region0: #{tpu_custom_call.1}
  #allocation0 [shape = 'u32[]', space=smem, size = 0x4, offset = 0x4, fixed_abs, tag = 'smem constant byte address 0x4 - core index']
  #allocation1 [shape = 'u32[144,128]{1,0:T(1,128)}', space=vmem, size = 0x12000, scoped, tag = 'internal scratch']
  %s0 = inlined_call_operand.vmem [shape: bf16[64,32], index: 0, kind: input, shape index: {}]
  %s1 = inlined_call_operand.vmem [shape: bf16[32,40], index: 1, kind: input, shape index: {}]
  %s2 = inlined_call_operand.vmem [shape: f32[64,32], index: 2, kind: output, shape index: {0}]
  %s3 = inlined_call_operand.vmem [shape: f32[64,4], index: 3, kind: output, shape index: {1}]
  %s4 = inlined_call_operand.vmem [shape: f32[64,4], index: 4, kind: output, shape index: {2}]
  %5 = xla_tuple %s2, %s3, %s4
  %s6 = sld [smem:[#allocation0]]
  $region34: #{tpu_custom_call.1} parent=0
    _
  %s8 = ssub.s32 1, %s6
  %s9 = scalar_select 0, %s8, %s6
  // Predicated region
  $region2: #{tpu_custom_call.1} parent=0 // pred_check
    _
  $region3: #{tpu_custom_call.1} parent=0 // pred_check_branch
    %11 = sbr.rel (0) target = $region5
  $region4: #{tpu_custom_call.1} parent=0 // pred_region
    _
  $region5: #{tpu_custom_call.1} parent=0 // pred_fallthru
    _
  // Predicated region
  $region6: #{tpu_custom_call.1} parent=0 // pred_check
    _
  $region7: #{tpu_custom_call.1} parent=0 // pred_check_branch
    %13 = sbr.rel (0) target = $region9
  $region8: #{tpu_custom_call.1} parent=0 // pred_region
    _
  $region9: #{tpu_custom_call.1} parent=0 // pred_fallthru
    _
  %v15 = vld [vmem:[%s0] sm:$0xf]
  %v16 = vld [vmem:[%s0 + $0x4] sm:$0xf]
  %v17 = vld [vmem:[%s0 + $0x8] sm:$0xf]
  %v18 = vld [vmem:[%s0 + $0xc] sm:$0xf]
  %v19 = vld [vmem:[%s0 + $0x10] sm:$0xf]
  %v20 = vld [vmem:[%s0 + $0x14] sm:$0xf]
  %v21 = vld [vmem:[%s0 + $0x18] sm:$0xf]
  %v22 = vld [vmem:[%s0 + $0x1c] sm:$0xf]
  %v23 = vld [vmem:[%s1] sm:$0xf]
  %v24 = vld [vmem:[%s1 + $0x4] sm:$0xf]
  %v25 = vld [vmem:[%s1 + $0x8] sm:$0xf]
  %v26 = vld [vmem:[%s1 + $0xc] sm:$0xf]
  %v35 = vunpack.c.l.b16 %v15
  %v36 = vunpack.c.l.b16 %v16
  %v37 = vunpack.c.l.b16 %v17
  %v38 = vunpack.c.l.b16 %v18
  %v39 = vunpack.c.l.b16 %v19
  %v40 = vunpack.c.l.b16 %v20
  %v41 = vunpack.c.l.b16 %v21
  %v42 = vunpack.c.l.b16 %v22
  %v43 = vpack.c.b16 %v36, %v35
  %v44 = vpack.c.b16 %v38, %v37
  %v45 = vpack.c.b16 %v40, %v39
  %v46 = vpack.c.b16 %v42, %v41
  %v51 = vunpack.c.l.b16 %v23
  %v52 = vunpack.c.l.b16 %v24
  %v53 = vunpack.c.l.b16 %v25
  %v54 = vunpack.c.l.b16 %v26
  %v55 = vpack.c.b16 %v52, %v51
  %v56 = vpack.c.b16 %v54, %v53
  %vm59 = vcmask 261120
  %v61 = vsel %vm59, %v43, 0
  %v64 = vsel %vm59, %v44, 0
  %v67 = vsel %vm59, %v45, 0
  %v70 = vsel %vm59, %v46, 0
  %72 = vmatprep.subr.bf16.mxu0 0
  %73 = vmatpush1.bf16.msra.mxu0 0
  %74 = vmatprep.subr.bf16.mxu0 0
  %75 = vmatpush1.bf16.msra.mxu0 0
  %76 = vmatprep.subr.bf16.mxu0 0
  %77 = vmatpush1.bf16.msra.mxu0 0
  %78 = vmatprep.subr.bf16.mxu0 0
  %79 = vmatpush1.bf16.msra.mxu0 0
  %80 = vmatprep.subr.bf16.mxu0 0
  %81 = vmatpush1.bf16.msra.mxu0 0
  %82 = vmatprep.subr.bf16.mxu0 0
  %83 = vmatpush1.bf16.msra.mxu0 0
  %84 = vmatprep.subr.bf16.mxu0 0
  %85 = vmatpush1.bf16.msra.mxu0 %v56
  %86 = vmatprep.subr.bf16.mxu0 0
  %87 = vmatpush1.bf16.msra.mxu0 %v55
  %88 = vmatprep.subr.bf16.mxu0 0
  %89 = vmatpush2.bf16.msra.mxu0 0
  %90 = vmatprep.subr.bf16.mxu0 0
  %91 = vmatpush2.bf16.msra.mxu0 0
  %92 = vmatprep.subr.bf16.mxu0 0
  %93 = vmatpush2.bf16.msra.mxu0 0
  %94 = vmatprep.subr.bf16.mxu0 0
  %95 = vmatpush2.bf16.msra.mxu0 0
  %96 = vmatprep.subr.bf16.mxu0 0
  %97 = vmatpush2.bf16.msra.mxu0 0
  %98 = vmatprep.subr.bf16.mxu0 0
  %99 = vmatpush2.bf16.msra.mxu0 0
  %100 = vmatprep.subr.bf16.mxu0 0
  %101 = vmatpush2.bf16.msra.mxu0 0
  %102 = vmatprep.subr.bf16.mxu0 0
  %103 = vmatpush2.bf16.msra.mxu0 0
  %104 = vmatprep.mubr.bf16.mxu0 0
  %105 = vmatmul.mubr.bf16.gmra.mxu0 %v61
  %v106 = vpop.f32.mrf.mxu0
  %v107 = vadd.f32 0.0, %v106
  %v108 = vpop.f32.mrf.mxu0
  %v109 = vpop.f32.mrf.mxu0
  %v110 = vadd.f32 0.0, %v109
  %v111 = vpop.f32.mrf.mxu0
  %112 = vmatprep.mubr.bf16.mxu0 0
  %113 = vmatmul.mubr.bf16.gmra.mxu0 %v64
  %v114 = vpop.f32.mrf.mxu0
  %v115 = vadd.f32 0.0, %v114
  %v116 = vpop.f32.mrf.mxu0
  %v117 = vpop.f32.mrf.mxu0
  %v118 = vadd.f32 0.0, %v117
  %v119 = vpop.f32.mrf.mxu0
  %120 = vmatprep.mubr.bf16.mxu0 0
  %121 = vmatmul.mubr.bf16.gmra.mxu0 %v67
  %v122 = vpop.f32.mrf.mxu0
  %v123 = vadd.f32 0.0, %v122
  %v124 = vpop.f32.mrf.mxu0
  %v125 = vpop.f32.mrf.mxu0
  %v126 = vadd.f32 0.0, %v125
  %v127 = vpop.f32.mrf.mxu0
  %128 = vmatprep.mubr.bf16.mxu0 0
  %129 = vmatmul.mubr.bf16.gmra.mxu0 %v70
  %v130 = vpop.f32.mrf.mxu0
  %v131 = vadd.f32 0.0, %v130
  %v132 = vpop.f32.mrf.mxu0
  %v133 = vpop.f32.mrf.mxu0
  %v134 = vadd.f32 0.0, %v133
  %v135 = vpop.f32.mrf.mxu0
  %136 = vdwg.mxu0
  %137 = vst.msk [vmem:[%s2] sm:$0xff] %vm59, %v107
  %138 = vst.msk [vmem:[%s2 + $0x8] sm:$0xff] %vm59, %v110
  %139 = vst.msk [vmem:[%s2 + $0x10] sm:$0xff] %vm59, %v115
  %140 = vst.msk [vmem:[%s2 + $0x18] sm:$0xff] %vm59, %v118
  %141 = vst.msk [vmem:[%s2 + $0x20] sm:$0xff] %vm59, %v123
  %142 = vst.msk [vmem:[%s2 + $0x28] sm:$0xff] %vm59, %v126
  %143 = vst.msk [vmem:[%s2 + $0x30] sm:$0xff] %vm59, %v131
  %144 = vst.msk [vmem:[%s2 + $0x38] sm:$0xff] %vm59, %v134
  %153 = vrot.lane.b32.xlu0 %v107, 96
  %v154 = vpop.permute.xlu0 %153
  %155 = vrot.lane.b32.xlu0 %v110, 96
  %v156 = vpop.permute.xlu0 %155
  %157 = vrot.lane.b32.xlu0 %v115, 96
  %v158 = vpop.permute.xlu0 %157
  %159 = vrot.lane.b32.xlu0 %v118, 96
  %v160 = vpop.permute.xlu0 %159
  %161 = vrot.lane.b32.xlu0 %v123, 96
  %v162 = vpop.permute.xlu0 %161
  %163 = vrot.lane.b32.xlu0 %v126, 96
  %v164 = vpop.permute.xlu0 %163
  %165 = vrot.lane.b32.xlu0 %v131, 96
  %v166 = vpop.permute.xlu0 %165
  %167 = vrot.lane.b32.xlu0 %v134, 96
  %v168 = vpop.permute.xlu0 %167
  %vm177 = vcmask 31744
  %178 = vst.msk [vmem:[%s3] sm:$0xff] %vm177, %v154
  %179 = vst.msk [vmem:[%s3 + $0x8] sm:$0xff] %vm177, %v156
  %180 = vst.msk [vmem:[%s3 + $0x10] sm:$0xff] %vm177, %v158
  %181 = vst.msk [vmem:[%s3 + $0x18] sm:$0xff] %vm177, %v160
  %182 = vst.msk [vmem:[%s3 + $0x20] sm:$0xff] %vm177, %v162
  %183 = vst.msk [vmem:[%s3 + $0x28] sm:$0xff] %vm177, %v164
  %184 = vst.msk [vmem:[%s3 + $0x30] sm:$0xff] %vm177, %v166
  %185 = vst.msk [vmem:[%s3 + $0x38] sm:$0xff] %vm177, %v168
  %186 = vrot.lane.b32.xlu0 %v107, 92
  %v187 = vpop.permute.xlu0 %186
  %188 = vrot.lane.b32.xlu0 %v110, 92
  %v189 = vpop.permute.xlu0 %188
  %190 = vrot.lane.b32.xlu0 %v115, 92
  %v191 = vpop.permute.xlu0 %190
  %192 = vrot.lane.b32.xlu0 %v118, 92
  %v193 = vpop.permute.xlu0 %192
  %194 = vrot.lane.b32.xlu0 %v123, 92
  %v195 = vpop.permute.xlu0 %194
  %196 = vrot.lane.b32.xlu0 %v126, 92
  %v197 = vpop.permute.xlu0 %196
  %198 = vrot.lane.b32.xlu0 %v131, 92
  %v199 = vpop.permute.xlu0 %198
  %200 = vrot.lane.b32.xlu0 %v134, 92
  %v201 = vpop.permute.xlu0 %200
  %210 = vst.msk [vmem:[%s4] sm:$0xff] %vm177, %v187
  %211 = vst.msk [vmem:[%s4 + $0x8] sm:$0xff] %vm177, %v189
  %212 = vst.msk [vmem:[%s4 + $0x10] sm:$0xff] %vm177, %v191
  %213 = vst.msk [vmem:[%s4 + $0x18] sm:$0xff] %vm177, %v193
  %214 = vst.msk [vmem:[%s4 + $0x20] sm:$0xff] %vm177, %v195
  %215 = vst.msk [vmem:[%s4 + $0x28] sm:$0xff] %vm177, %v197
  %216 = vst.msk [vmem:[%s4 + $0x30] sm:$0xff] %vm177, %v199
  %217 = vst.msk [vmem:[%s4 + $0x38] sm:$0xff] %vm177, %v201
  // Predicated region
  $region10: #{tpu_custom_call.1} parent=0 // pred_check
    _
  $region11: #{tpu_custom_call.1} parent=0 // pred_check_branch
    %219 = sbr.rel (0) target = $region13
  $region12: #{tpu_custom_call.1} parent=0 // pred_region
    _
  $region13: #{tpu_custom_call.1} parent=0 // pred_fallthru
    _
  // Predicated region
  $region14: #{tpu_custom_call.1} parent=0 // pred_check
    _
  $region15: #{tpu_custom_call.1} parent=0 // pred_check_branch
    %221 = sbr.rel (0) target = $region17
  $region16: #{tpu_custom_call.1} parent=0 // pred_region
    _
  $region17: #{tpu_custom_call.1} parent=0 // pred_fallthru
    _
  // Predicated region
  $region18: #{tpu_custom_call.1} parent=0 // pred_check
    _
  $region19: #{tpu_custom_call.1} parent=0 // pred_check_branch
    %223 = sbr.rel (0) target = $region21
  $region20: #{tpu_custom_call.1} parent=0 // pred_region
    _
  $region21: #{tpu_custom_call.1} parent=0 // pred_fallthru
    _
  // Predicated region
  $region22: #{tpu_custom_call.1} parent=0 // pred_check
    _
  $region23: #{tpu_custom_call.1} parent=0 // pred_check_branch
    %225 = sbr.rel (0) target = $region25
  $region24: #{tpu_custom_call.1} parent=0 // pred_region
    _
  $region25: #{tpu_custom_call.1} parent=0 // pred_fallthru
    _
  // Predicated region
  $region26: #{tpu_custom_call.1} parent=0 // pred_check
    _
  $region27: #{tpu_custom_call.1} parent=0 // pred_check_branch
    %227 = sbr.rel (0) target = $region29
  $region28: #{tpu_custom_call.1} parent=0 // pred_region
    _
  $region29: #{tpu_custom_call.1} parent=0 // pred_fallthru
    _
  // Predicated region
  $region30: #{tpu_custom_call.1} parent=0 // pred_check
    _
  $region31: #{tpu_custom_call.1} parent=0 // pred_check_branch
    %229 = sbr.rel (0) target = $region33
  $region32: #{tpu_custom_call.1} parent=0 // pred_region
    _
  $region33: #{tpu_custom_call.1} parent=0 // pred_fallthru
    _

</llo_original>
